<compile_context>
chip_gen: v7x
topology: tpu7x:2x2x1
jax: 0.10.0
libtpu: 0.0.40
codegen_flags: <defaults>
</compile_context>

<pallas_src>
import functools

import jax
import jax.numpy as jnp
from jax.experimental import pallas as pl
from jax.experimental.pallas import tpu as pltpu

_NEG_BIG = -1e30  # finite "-inf" so online-softmax init never produces NaN


def _round_up(x, m):
    return (x + m - 1) // m * m


def _agp_kernel(x_ref, w_ref, o_ref, m_sc, l_sc, acc_sc, *,
                seq_len, seq_tile, seq_rem):
    # x_ref: (Bt, tS, D) native dtype   w_ref: (1, D) f32   o_ref: (Bt, D)
    # m_sc/l_sc: (Bt, 1) f32            acc_sc: (Bt, D) f32
    ki = pl.program_id(1)
    last = pl.num_programs(1) - 1

    @pl.when(ki == 0)
    def _init():
        m_sc[...] = jnp.full_like(m_sc, _NEG_BIG)
        l_sc[...] = jnp.zeros_like(l_sc)
        acc_sc[...] = jnp.zeros_like(acc_sc)

    if seq_rem:
        # Ragged last seq tile: the DMA only fills the first `seq_rem` rows of
        # the block; zero the garbage tail (gated to the last tile only) so
        # the MXU contraction below can never see Inf/NaN (0 * NaN == NaN).
        @pl.when(ki == last)
        def _zero_tail():
            bt, ts, d = x_ref.shape
            x_ref[:, seq_rem:, :] = jnp.zeros((bt, ts - seq_rem, d),
                                              x_ref.dtype)

    x = x_ref[...]          # native dtype tile; no f32 copy materialized
    w = w_ref[...]          # (1, D) f32

    # Attention logits on the VPU (product promotes to f32 via w) + XLU lane
    # reduce.  The nn.Linear bias is omitted: softmax over the sequence axis
    # is shift invariant, so it cannot change the output.
    logits = jnp.sum(x * w, axis=-1)                         # (Bt, tS) f32

    if seq_rem:
        # (Bt, tS) mask -- D x smaller than the tile, negligible vs DMA; it is
        # a no-op select on every tile except the ragged last one, where it
        # keeps the zeroed tail rows out of the softmax denominator.
        pos = ki * seq_tile + jax.lax.broadcasted_iota(
            jnp.int32, logits.shape, 1)
        logits = jnp.where(pos < seq_len, logits, _NEG_BIG)

    # Online softmax over the sequence axis.
    tile_max = jnp.max(logits, axis=-1, keepdims=True)       # (Bt, 1)
    m_prev = m_sc[...]
    m_new = jnp.maximum(m_prev, tile_max)
    alpha = jnp.exp(m_prev - m_new)                          # (Bt, 1)
    p = jnp.exp(logits - m_new)                              # (Bt, tS) f32

    l_sc[...] = alpha * l_sc[...] + jnp.sum(p, axis=-1, keepdims=True)

    # Weighted accumulation on the MXU: batched (1, tS) @ (tS, D) per batch
    # row, f32 accumulation (mirrors the flash-attention einsum pattern).
    contrib = jnp.einsum(
        "bqs,bsd->bqd", p.astype(x.dtype)[:, None, :], x,
        preferred_element_type=jnp.float32)[:, 0, :]         # (Bt, D) f32
    acc_sc[...] = alpha * acc_sc[...] + contrib
    m_sc[...] = m_new

    @pl.when(ki == last)
    def _finalize():
        inv_l = pl.reciprocal(l_sc[...], approx=False)       # exact: 1e-5 tol
        o_ref[...] = (acc_sc[...] * inv_l).astype(o_ref.dtype)


def attention_guided_pooling(x, w, b=None, *, target_x_block_bytes=None):
    """x: (B, S, D), w: (D, 1), b ignored (softmax shift invariance) -> (B, D)."""
    del b  # mathematically a no-op for softmax over the sequence axis
    B, S, D = x.shape
    itemsize = jnp.dtype(x.dtype).itemsize
    D_lane = _round_up(D, 128)   # lane-padded VMEM footprint of the last dim

    # 8 batch rows per step (sublane-dense output stores); a full-B block when
    # B < 8 (a full array dim is always a legal block dim).
    Bt = 8 if B >= 8 else B

    # Size the sequence tile from the real VMEM capacity: the working set is
    # ~ 2x double-buffered native block + one f32-sized temp (logit product).
    try:
        info = pltpu.get_tpu_info()
        vmem_cap = int(getattr(info, "vmem_capacity_bytes", 64 * 1024 * 1024))
    except Exception:  # conservative fallback (v7x-sized VMEM)
        vmem_cap = 64 * 1024 * 1024
    if target_x_block_bytes is None:
        target_x_block_bytes = max(
            1 << 20, min(16 << 20, (vmem_cap - 24 * 1024 * 1024) // 3))

    row_bytes = Bt * D_lane * itemsize
    max_ts = max(8, (target_x_block_bytes // row_bytes) // 8 * 8)
    if S <= max_ts:
        tS = S           # whole sequence in one tile; no masking at all
    else:
        tS = max_ts      # multiple of 8; ragged last tile handled in-kernel
    seq_rem = S % tS

    grid = (pl.cdiv(B, Bt), pl.cdiv(S, tS))

    # No host-side padding of x: boundaries handled by partial blocks +
    # in-kernel masking -> single HBM pass over x, no extra copy.
    w_row = jnp.reshape(w, (1, D)).astype(jnp.float32)

    # VMEM budget: double-buffered native x block + one f32 temp + out blocks
    # + accumulators + margin; capped against the hardware capacity.
    tS_pad = _round_up(tS, 8)
    x_block = Bt * tS_pad * D_lane * itemsize
    x_block_f32 = Bt * tS_pad * D_lane * 4
    out_block = _round_up(Bt, 8) * D_lane * itemsize
    acc_bytes = _round_up(Bt, 8) * D_lane * 4 + 2 * 8 * 128 * 4
    vmem_need = (2 * x_block + x_block_f32 + 2 * out_block + acc_bytes
                 + 2 * 8 * D_lane * 4 + (4 << 20))
    vmem_limit = int(min(vmem_cap - (2 << 20), max(vmem_need, 32 << 20)))

    kernel = functools.partial(
        _agp_kernel, seq_len=S, seq_tile=tS, seq_rem=seq_rem)

    return pl.pallas_call(
        kernel,
        out_shape=jax.ShapeDtypeStruct((B, D), x.dtype),
        grid_spec=pltpu.PrefetchScalarGridSpec(
            num_scalar_prefetch=0,
            grid=grid,
            in_specs=[
                pl.BlockSpec((Bt, tS, D), lambda bi, ki: (bi, ki, 0)),
                pl.BlockSpec((1, D), lambda bi, ki: (0, 0)),
            ],
            out_specs=pl.BlockSpec((Bt, D), lambda bi, ki: (bi, 0)),
            scratch_shapes=[
                pltpu.VMEM((Bt, 1), jnp.float32),   # running max
                pltpu.VMEM((Bt, 1), jnp.float32),   # running denom
                pltpu.VMEM((Bt, D), jnp.float32),   # weighted-sum accumulator
            ],
        ),
        compiler_params=pltpu.CompilerParams(
            dimension_semantics=("parallel", "arbitrary"),
            vmem_limit_bytes=vmem_limit,
        ),
    )(x, w_row)


def _reference(x, w, b):
    logits = jnp.einsum("bsd,do->bso", x, w) + b[0, 0]     # (B, S, 1)
    p = jax.nn.softmax(logits, axis=1)
    return jnp.sum(p * x, axis=1)                          # (B, D)


def _check(B, S, D, key, **kwargs):
    kx, kw, kb = jax.random.split(key, 3)
    x = jax.random.normal(kx, (B, S, D), dtype=jnp.float32)
    # Deterministic "nn.Linear(input_dim, 1)" parameters (synthetic init).
    w = jax.random.normal(kw, (D, 1), dtype=jnp.float32) * (1.0 / jnp.sqrt(D))
    b = jax.random.normal(kb, (1, 1), dtype=jnp.float32) * 0.1

    out = attention_guided_pooling(x, w, b, **kwargs)
    out = jax.block_until_ready(out)

    ref = _reference(x, w, b)
    assert out.shape == (B, D)
    err = float(jnp.max(jnp.abs(out - ref)))
    assert jnp.allclose(out, ref, atol=1e-5, rtol=1e-5), err


if __name__ == "__main__":
    key = jax.random.PRNGKey(0)
    k0, k1, k2 = jax.random.split(key, 3)
    # Shapes implied by the module's forward: (batch, seq, hidden).
    _check(2, 8, 32, k0)
    _check(3, 13, 32, k1)
    # Multi-tile path: ragged batch block, ragged last seq tile (in-kernel
    # mask + tail zeroing), online-softmax accumulation across seq tiles.
    _check(10, 50, 32, k2, target_x_block_bytes=64 * 1024)
    print("KERNEL_OK")
</pallas_src>

<mosaic_0001>
module attributes {stable_mosaic.version = 11 : i64} {
  func.func @_agp_kernel(%arg0: i32, %arg1: i32, %arg2: memref<2x8x32xf32, #tpu.memory_space<vmem>>, %arg3: memref<1x32xf32, #tpu.memory_space<vmem>>, %arg4: memref<2x32xf32, #tpu.memory_space<vmem>>, %arg5: memref<2x1xf32, #tpu.memory_space<vmem>>, %arg6: memref<2x1xf32, #tpu.memory_space<vmem>>, %arg7: memref<2x32xf32, #tpu.memory_space<vmem>>) attributes {dimension_semantics = [#tpu.dimension_semantics<parallel>, #tpu.dimension_semantics<arbitrary>], iteration_bounds = array<i64: 1, 1>, scalar_prefetch = 0 : i64, scratch_operands = 3 : i64, tpu.core_type = #tpu.core_type<tc>, window_params = [{transform_indices = @transform_0, window_bounds = array<i64: 2, 8, 32>}, {pipeline_mode = #tpu.pipeline_mode<synchronous>, transform_indices = @transform_1, window_bounds = array<i64: 1, 32>}, {transform_indices = @transform_2, window_bounds = array<i64: 2, 32>}]} {
    %c0_i32 = arith.constant 0 : i32
    %0 = arith.cmpi eq, %arg1, %c0_i32 : i32
    %1 = arith.extui %0 : i1 to i32
    %c0_i32_0 = arith.constant 0 : i32
    %2 = arith.cmpi ne, %1, %c0_i32_0 : i32
    scf.if %2 {
      %cst_22 = arith.constant -1.000000e+30 : f32
      %36 = vector.broadcast %cst_22 : f32 to vector<2x1xf32>
      %c0_23 = arith.constant 0 : index
      %c0_24 = arith.constant 0 : index
      %37 = vector.load %arg5[%c0_23, %c0_24] : memref<2x1xf32, #tpu.memory_space<vmem>>, vector<2x1xf32>
      tpu.vector_store %arg5[%c0_23, %c0_24], %36 {strides = array<i32>} : memref<2x1xf32, #tpu.memory_space<vmem>>, vector<2x1xf32>,
      %cst_25 = arith.constant 0.000000e+00 : f32
      %38 = vector.broadcast %cst_25 : f32 to vector<2x1xf32>
      %c0_26 = arith.constant 0 : index
      %c0_27 = arith.constant 0 : index
      %39 = vector.load %arg6[%c0_26, %c0_27] : memref<2x1xf32, #tpu.memory_space<vmem>>, vector<2x1xf32>
      tpu.vector_store %arg6[%c0_26, %c0_27], %38 {strides = array<i32>} : memref<2x1xf32, #tpu.memory_space<vmem>>, vector<2x1xf32>,
      %cst_28 = arith.constant 0.000000e+00 : f32
      %40 = vector.broadcast %cst_28 : f32 to vector<2x32xf32>
      %c0_29 = arith.constant 0 : index
      %c0_30 = arith.constant 0 : index
      %41 = vector.load %arg7[%c0_29, %c0_30] : memref<2x32xf32, #tpu.memory_space<vmem>>, vector<2x32xf32>
      tpu.vector_store %arg7[%c0_29, %c0_30], %40 {strides = array<i32>} : memref<2x32xf32, #tpu.memory_space<vmem>>, vector<2x32xf32>,
    } else {
    }
    %c0 = arith.constant 0 : index
    %c0_1 = arith.constant 0 : index
    %c0_2 = arith.constant 0 : index
    %3 = vector.load %arg2[%c0, %c0_1, %c0_2] : memref<2x8x32xf32, #tpu.memory_space<vmem>>, vector<2x8x32xf32>
    %c0_3 = arith.constant 0 : index
    %c0_4 = arith.constant 0 : index
    %4 = vector.load %arg3[%c0_3, %c0_4] : memref<1x32xf32, #tpu.memory_space<vmem>>, vector<1x32xf32>
    %5 = vector.shape_cast %4 : vector<1x32xf32> to vector<1x1x32xf32>
    %6 = vector.broadcast %5 : vector<1x1x32xf32> to vector<2x8x32xf32>
    %7 = arith.mulf %3, %6 : vector<2x8x32xf32>
    %cst = arith.constant dense<0.000000e+00> : vector<2x8xf32>
    %8 = vector.multi_reduction <add>, %7, %cst [2] : vector<2x8x32xf32> to vector<2x8xf32>
    %cst_5 = arith.constant dense<0xFF800000> : vector<2xf32>
    %9 = vector.multi_reduction <maximumf>, %8, %cst_5 [1] : vector<2x8xf32> to vector<2xf32>
    %10 = vector.shape_cast %9 : vector<2xf32> to vector<2x1xf32>
    %c0_6 = arith.constant 0 : index
    %c0_7 = arith.constant 0 : index
    %11 = vector.load %arg5[%c0_6, %c0_7] : memref<2x1xf32, #tpu.memory_space<vmem>>, vector<2x1xf32>
    %12 = arith.maximumf %11, %10 : vector<2x1xf32>
    %13 = arith.subf %11, %12 : vector<2x1xf32>
    %14 = math.exp %13 : vector<2x1xf32>
    %15 = vector.broadcast %12 : vector<2x1xf32> to vector<2x8xf32>
    %16 = arith.subf %8, %15 : vector<2x8xf32>
    %17 = math.exp %16 : vector<2x8xf32>
    %c0_8 = arith.constant 0 : index
    %c0_9 = arith.constant 0 : index
    %18 = vector.load %arg6[%c0_8, %c0_9] : memref<2x1xf32, #tpu.memory_space<vmem>>, vector<2x1xf32>
    %19 = arith.mulf %14, %18 : vector<2x1xf32>
    %cst_10 = arith.constant dense<0.000000e+00> : vector<2xf32>
    %20 = vector.multi_reduction <add>, %17, %cst_10 [1] : vector<2x8xf32> to vector<2xf32>
    %21 = vector.shape_cast %20 : vector<2xf32> to vector<2x1xf32>
    %22 = arith.addf %19, %21 : vector<2x1xf32>
    %c0_11 = arith.constant 0 : index
    %c0_12 = arith.constant 0 : index
    %23 = vector.load %arg6[%c0_11, %c0_12] : memref<2x1xf32, #tpu.memory_space<vmem>>, vector<2x1xf32>
    tpu.vector_store %arg6[%c0_11, %c0_12], %22 {strides = array<i32>} : memref<2x1xf32, #tpu.memory_space<vmem>>, vector<2x1xf32>,
    %24 = vector.shape_cast %17 : vector<2x8xf32> to vector<2x1x8xf32>
    "tpu.trace_start"() <{level = 10 : i32, message = "bqs,bsd->bqd"}> : () -> ()
    %cst_13 = arith.constant dense<0.000000e+00> : vector<2x1x32xf32>
    %25 = tpu.matmul %24, %3, %cst_13 {dimension_numbers = #tpu.dot_dimension_numbers<[2], [1], [1], [2], [0, 0, 0, 1, 1, 2], [0], [0]>} : vector<2x1x8xf32>, vector<2x8x32xf32>, vector<2x1x32xf32> -> vector<2x1x32xf32>
    "tpu.trace_stop"() : () -> ()
    %26 = vector.shape_cast %25 : vector<2x1x32xf32> to vector<2x32xf32>
    %c0_14 = arith.constant 0 : index
    %c0_15 = arith.constant 0 : index
    %27 = vector.load %arg7[%c0_14, %c0_15] : memref<2x32xf32, #tpu.memory_space<vmem>>, vector<2x32xf32>
    %28 = vector.broadcast %14 : vector<2x1xf32> to vector<2x32xf32>
    %29 = arith.mulf %28, %27 : vector<2x32xf32>
    %30 = arith.addf %29, %26 : vector<2x32xf32>
    %c0_16 = arith.constant 0 : index
    %c0_17 = arith.constant 0 : index
    %31 = vector.load %arg7[%c0_16, %c0_17] : memref<2x32xf32, #tpu.memory_space<vmem>>, vector<2x32xf32>
    tpu.vector_store %arg7[%c0_16, %c0_17], %30 {strides = array<i32>} : memref<2x32xf32, #tpu.memory_space<vmem>>, vector<2x32xf32>,
    %c0_18 = arith.constant 0 : index
    %c0_19 = arith.constant 0 : index
    %32 = vector.load %arg5[%c0_18, %c0_19] : memref<2x1xf32, #tpu.memory_space<vmem>>, vector<2x1xf32>
    tpu.vector_store %arg5[%c0_18, %c0_19], %12 {strides = array<i32>} : memref<2x1xf32, #tpu.memory_space<vmem>>, vector<2x1xf32>,
    %c0_i32_20 = arith.constant 0 : i32
    %33 = arith.cmpi eq, %arg1, %c0_i32_20 : i32
    %34 = arith.extui %33 : i1 to i32
    %c0_i32_21 = arith.constant 0 : i32
    %35 = arith.cmpi ne, %34, %c0_i32_21 : i32
    scf.if %35 {
      %c0_22 = arith.constant 0 : index
      %c0_23 = arith.constant 0 : index
      %36 = vector.load %arg6[%c0_22, %c0_23] : memref<2x1xf32, #tpu.memory_space<vmem>>, vector<2x1xf32>
      %37 = tpu.reciprocal %36 : vector<2x1xf32> -> vector<2x1xf32>
      %c0_24 = arith.constant 0 : index
      %c0_25 = arith.constant 0 : index
      %38 = vector.load %arg7[%c0_24, %c0_25] : memref<2x32xf32, #tpu.memory_space<vmem>>, vector<2x32xf32>
      %39 = vector.broadcast %37 : vector<2x1xf32> to vector<2x32xf32>
      %40 = arith.mulf %38, %39 : vector<2x32xf32>
      %c0_26 = arith.constant 0 : index
      %c0_27 = arith.constant 0 : index
      %41 = vector.load %arg4[%c0_26, %c0_27] : memref<2x32xf32, #tpu.memory_space<vmem>>, vector<2x32xf32>
      tpu.vector_store %arg4[%c0_26, %c0_27], %40 {strides = array<i32>} : memref<2x32xf32, #tpu.memory_space<vmem>>, vector<2x32xf32>,
    } else {
    }
    return
  }
  func.func @transform_0(%arg0: i32, %arg1: i32) -> (i32, i32, i32) {
    %c0_i32 = arith.constant 0 : i32
    %c0_i32_0 = arith.constant 0 : i32
    return %arg0, %arg1, %c0_i32 : i32, i32, i32
  }
  func.func @transform_1(%arg0: i32, %arg1: i32) -> (i32, i32) {
    %c0_i32 = arith.constant 0 : i32
    %c0_i32_0 = arith.constant 0 : i32
    %c0_i32_1 = arith.constant 0 : i32
    return %c0_i32, %c0_i32_0 : i32, i32
  }
  func.func @transform_2(%arg0: i32, %arg1: i32) -> (i32, i32) {
    %c0_i32 = arith.constant 0 : i32
    %c0_i32_0 = arith.constant 0 : i32
    return %arg0, %c0_i32 : i32, i32
  }
}

</mosaic_0001>

<llo_original>
// kernel: tpu_custom_call.1
$region0: #{tpu_custom_call.1}
  #allocation0 [shape = 'u32[]', space=smem, size = 0x4, offset = 0x4, fixed_abs, tag = 'smem constant byte address 0x4 - core index']
  #allocation1 [shape = 'u32[144,128]{1,0:T(1,128)}', space=vmem, size = 0x12000, scoped, tag = 'internal scratch']
  #allocation2 [shape = 'f32[2,1]{1,0:T(2,128)}', space=vmem, size = 0x400, scoped, tag = 'scratch operand']
  #allocation3 [shape = 'f32[2,1]{1,0:T(2,128)}', space=vmem, size = 0x400, scoped, tag = 'scratch operand']
  #allocation4 [shape = 'f32[2,32]{1,0:T(2,128)}', space=vmem, size = 0x400, scoped, tag = 'scratch operand']
  %s0 = inlined_call_operand.hbm [shape: f32[2,8,32], index: 0, kind: input, shape index: {}]
  %s1 = inlined_call_operand.vmem [shape: f32[1,32], index: 1, kind: input, shape index: {}]
  %s2 = inlined_call_operand.hbm [shape: f32[2,32], index: 2, kind: output, shape index: {}]
  %s3 = sld [smem:[#allocation0]]
  $region30: #{tpu_custom_call.1} parent=0
    _
  %s5 = ssub.s32 1, %s3
  %s6 = scalar_select 0, %s5, %s3
  $region1: #{tpu_custom_call.1} parent=0
    #allocation5 [shape = 'u8[8192]{0}', space=vmem, size = 0x2000, scoped, tag = 'input window, operand 0, single buffered']
    #allocation6 [shape = 's32[1]{0}', space=sflag, size = 0x4, scoped, tag = 'scoped memory for tpu_custom_call.1']
    #allocation7 [shape = 's32[1]{0}', space=sflag, size = 0x4, scoped, tag = 'scoped memory for tpu_custom_call.1']
    #allocation8 [shape = 'u8[1024]{0}', space=vmem, size = 0x400, scoped, tag = 'output window, operand 0, single buffered']
    %7 = vsyncpa [#allocation6], 0
    %8 = vsyncpa [#allocation7], 0
    // Predicated region
    $region2: #{tpu_custom_call.1} parent=1 // pred_check
      _
    $region3: #{tpu_custom_call.1} parent=1 // pred_check_branch
      %10 = sbr.rel (0) target = $region5
    $region4: #{tpu_custom_call.1} parent=1 // pred_region
      %s12 = ssub.s32 256, 256
      %13 = vsyncadd [#allocation6], %s12
      %s14 = sshll.u32 [#allocation5], 4
      %s15 = int_to_ptr.vmem [resolvable:$true] %s14
      %20 = dma.hbm_to_vmem [thread:$0]  %s0, 256, %s15, [#allocation6], 128, 128, 8
    $region5: #{tpu_custom_call.1} parent=1 // pred_fallthru
      _
    // Predicated region
    $region6: #{tpu_custom_call.1} parent=1 // pred_check
      _
    $region7: #{tpu_custom_call.1} parent=1 // pred_check_branch
      %22 = sbr.rel (0) target = $region9
    $region8: #{tpu_custom_call.1} parent=1 // pred_region
      _
    $region9: #{tpu_custom_call.1} parent=1 // pred_fallthru
      _
    // Predicated region
    $region10: #{tpu_custom_call.1} parent=1 // pred_check
      _
    $region11: #{tpu_custom_call.1} parent=1 // pred_check_branch
      %24 = sbr.rel (0) target = $region13
    $region12: #{tpu_custom_call.1} parent=1 // pred_region
      %25 = dma.done [#allocation6], 256
    $region13: #{tpu_custom_call.1} parent=1 // pred_fallthru
      _
    %p26 = scmp.eq.s32.totalorder 0, 0
    // Predicated region
    $region14: #{tpu_custom_call.1} parent=1 // pred_check
      %p27 = pneg %p26
    $region15: #{tpu_custom_call.1} parent=1 // pred_check_branch
      %29 = sbr.rel (%p27) target = $region17
    $region16: #{tpu_custom_call.1} parent=1 // pred_region
      %vm30 = vcmask 1024
      %31 = vst.msk [vmem:[#allocation2] sm:$0x3] %vm30, -1e+30
      %32 = vst.msk [vmem:[#allocation3] sm:$0x3] %vm30, 0.0
      %vm33 = vcmask 254976
      %34 = vst.msk [vmem:[#allocation4] sm:$0x3] %vm33, 0.0
    $region17: #{tpu_custom_call.1} parent=1 // pred_fallthru
      _
    %v35 = vld [vmem:[#allocation5] sm:$0xff]
    %v36 = vld [vmem:[#allocation5 + $0x8] sm:$0xff]
    %v37 = vld [vmem:[%s1] sm:$0x1]
    %v39 = vlaneseq
    %v40 = vshrl.u32 %v39, 7
    %v41 = vsub.s32 0, %v40
    %v42 = vrot.slane %v37, %v41
    %v44 = vmul.f32 %v35, %v42
    %v45 = vmul.f32 %v36, %v42
    %vm46 = vcmask 261120
    %v47 = vsel %vm46, %v44, 0.0
    %48 = vadd.xlane.f32.xlu0 %v47
    %v49 = vpop.xlane.xlu0 %48
    %v50 = vsel %vm46, %v45, 0.0
    %51 = vadd.xlane.f32.xlu0 %v50
    %v52 = vpop.xlane.xlu0 %51
    %v55 = vlaneseq
    %v56 = vand.u32 %v55, 127
    %v57 = vlaneseq
    %v58 = vshrl.u32 %v57, 7
    %v59 = vsub.s32 %v56, %v58
    %v60 = vrot.slane %v49, %v59
    %v61 = vlaneseq
    %v62 = vshrl.u32 %v61, 7
    %v63 = vsub.s32 %v56, %v62
    %v64 = vrot.slane %v52, %v63
    %vm65 = vcmask 1041409
    %v66 = vsel %vm65, %v64, %v60
    %vm68 = vcmask 58368
    %v69 = vsel %vm68, %v66, -inf
    %70 = vmax.xlane.f32.xlu0 %v69
    %v71 = vpop.xlane.xlu0 %70
    %v72 = vld [vmem:[#allocation2] sm:$0x3]
    %v73 = vmax.f32 %v72, %v71
    %v74 = vsub.f32 %v72, %v73
    %v75 = vmul.f32 %v74, 1.442695
    %v76 = vpow.pop %v75
    %78 = vset.pattern.permute.xlu0 0
    %79 = vperm.xlu0 %78, %v73
    %v80 = vpop.permute.xlu0 %79
    %v81 = vlaneseq
    %v82 = vshrl.u32 %v81, 7
    %v83 = vsub.s32 0, %v82
    %v84 = vrot.slane %v80, %v83
    %v85 = vlaneseq
    %v86 = vshrl.u32 %v85, 7
    %v87 = vsub.s32 1, %v86
    %v88 = vrot.slane %v80, %v87
    %v91 = vsub.f32 %v49, %v84
    %v92 = vsub.f32 %v52, %v88
    %v93 = vmul.f32 %v91, 1.442695
    %v94 = vpow.pop %v93
    %v95 = vmul.f32 %v92, 1.442695
    %v96 = vpow.pop %v95
    %v97 = vld [vmem:[#allocation3] sm:$0x3]
    %v98 = vmul.f32 %v76, %v97
    %101 = vset.pattern.permute.xlu0 0
    %102 = vperm.xlu0 %101, %v94
    %v103 = vpop.permute.xlu0 %102
    %104 = vset.pattern.permute.xlu0 0
    %105 = vperm.xlu0 %104, %v96
    %v106 = vpop.permute.xlu0 %105
    %v107 = vlaneseq
    %v108 = vshrl.u32 %v107, 7
    %v109 = vsub.s32 %v56, %v108
    %v110 = vrot.slane %v103, %v109
    %v111 = vlaneseq
    %v112 = vshrl.u32 %v111, 7
    %v113 = vsub.s32 %v56, %v112
    %v114 = vrot.slane %v106, %v113
    %v115 = vsel %vm65, %v114, %v110
    %v117 = vsel %vm68, %v115, 0.0
    %118 = vadd.xlane.f32.xlu0 %v117
    %v119 = vpop.xlane.xlu0 %118
    %v120 = vadd.f32 %v98, %v119
    %vm121 = vcmask 1024
    %122 = vst.msk [vmem:[#allocation3] sm:$0x3] %vm121, %v120
    %vm123 = vcmask 64512
    %v124 = vsel %vm123, %v110, 0
    %126 = vmatprep.subr.mxu0 0.0
    %127 = vmatpush1.msra.mxu0 %v35
    %128 = vmatprep.subr.mxu0 0.0
    %129 = vmatpush1.msra.mxu0 0.0
    %130 = vmatprep.subr.mxu0 0.0
    %131 = vmatpush1.msra.mxu0 0.0
    %132 = vmatprep.subr.mxu0 0.0
    %133 = vmatpush1.msra.mxu0 0.0
    %134 = vmatprep.subr.mxu0 0.0
    %135 = vmatpush1.msra.mxu0 0.0
    %136 = vmatprep.subr.mxu0 0.0
    %137 = vmatpush1.msra.mxu0 0.0
    %138 = vmatprep.subr.mxu0 0.0
    %139 = vmatpush1.msra.mxu0 0.0
    %140 = vmatprep.subr.mxu0 0.0
    %141 = vmatpush1.msra.mxu0 0.0
    %142 = vmatprep.subr.mxu0 0.0
    %143 = vmatpush1.msra.mxu0 0.0
    %144 = vmatprep.subr.mxu0 0.0
    %145 = vmatpush1.msra.mxu0 0.0
    %146 = vmatprep.subr.mxu0 0.0
    %147 = vmatpush1.msra.mxu0 0.0
    %148 = vmatprep.subr.mxu0 0.0
    %149 = vmatpush1.msra.mxu0 0.0
    %150 = vmatprep.subr.mxu0 0.0
    %151 = vmatpush1.msra.mxu0 0.0
    %152 = vmatprep.subr.mxu0 0.0
    %153 = vmatpush1.msra.mxu0 0.0
    %154 = vmatprep.subr.mxu0 0.0
    %155 = vmatpush1.msra.mxu0 0.0
    %156 = vmatprep.subr.mxu0 0.0
    %157 = vmatpush1.msra.mxu0 0.0
    %158 = vmatprep.subr.mxu0 0.0
    %159 = vmatpush1.msra.mxu0 0.0
    %160 = vmatprep.subr.mxu0 0.0
    %161 = vmatpush1.msra.mxu0 0.0
    %162 = vmatprep.subr.mxu0 0.0
    %163 = vmatpush1.msra.mxu0 0.0
    %164 = vmatprep.subr.mxu0 0.0
    %165 = vmatpush1.msra.mxu0 0.0
    %166 = vmatprep.subr.mxu0 0.0
    %167 = vmatpush1.msra.mxu0 0.0
    %168 = vmatprep.subr.mxu0 0.0
    %169 = vmatpush1.msra.mxu0 0.0
    %170 = vmatprep.subr.mxu0 0.0
    %171 = vmatpush1.msra.mxu0 0.0
    %172 = vmatprep.subr.mxu0 0.0
    %173 = vmatpush1.msra.mxu0 0.0
    %174 = vmatprep.subr.mxu0 0.0
    %175 = vmatpush1.msra.mxu0 0.0
    %176 = vmatprep.subr.mxu0 0.0
    %177 = vmatpush1.msra.mxu0 0.0
    %178 = vmatprep.subr.mxu0 0.0
    %179 = vmatpush1.msra.mxu0 0.0
    %180 = vmatprep.subr.mxu0 0.0
    %181 = vmatpush1.msra.mxu0 0.0
    %182 = vmatprep.subr.mxu0 0.0
    %183 = vmatpush1.msra.mxu0 0.0
    %184 = vmatprep.subr.mxu0 0.0
    %185 = vmatpush1.msra.mxu0 0.0
    %186 = vmatprep.subr.mxu0 0.0
    %187 = vmatpush1.msra.mxu0 0.0
    %188 = vmatprep.subr.mxu0 0.0
    %189 = vmatpush1.msra.mxu0 0.0
    %190 = vmatprep.mubr.f32.mxu0 0.0
    %191 = vmatmul.mubr.f32.gmra.mrb[0].mxu0 %v124
    %v192 = vpop.f32.mrb[0].mxu0
    %v193 = vadd.f32 0.0, %v192
    %v194 = vpop.f32.mrb[0].mxu0
    %195 = vdwg.mxu0
    %v196 = vsel %vm123, %v114, 0
    %198 = vmatprep.subr.mxu0 0.0
    %199 = vmatpush1.msra.mxu0 %v36
    %200 = vmatprep.subr.mxu0 0.0
    %201 = vmatpush1.msra.mxu0 0.0
    %202 = vmatprep.subr.mxu0 0.0
    %203 = vmatpush1.msra.mxu0 0.0
    %204 = vmatprep.subr.mxu0 0.0
    %205 = vmatpush1.msra.mxu0 0.0
    %206 = vmatprep.subr.mxu0 0.0
    %207 = vmatpush1.msra.mxu0 0.0
    %208 = vmatprep.subr.mxu0 0.0
    %209 = vmatpush1.msra.mxu0 0.0
    %210 = vmatprep.subr.mxu0 0.0
    %211 = vmatpush1.msra.mxu0 0.0
    %212 = vmatprep.subr.mxu0 0.0
    %213 = vmatpush1.msra.mxu0 0.0
    %214 = vmatprep.subr.mxu0 0.0
    %215 = vmatpush1.msra.mxu0 0.0
    %216 = vmatprep.subr.mxu0 0.0
    %217 = vmatpush1.msra.mxu0 0.0
    %218 = vmatprep.subr.mxu0 0.0
    %219 = vmatpush1.msra.mxu0 0.0
    %220 = vmatprep.subr.mxu0 0.0
    %221 = vmatpush1.msra.mxu0 0.0
    %222 = vmatprep.subr.mxu0 0.0
    %223 = vmatpush1.msra.mxu0 0.0
    %224 = vmatprep.subr.mxu0 0.0
    %225 = vmatpush1.msra.mxu0 0.0
    %226 = vmatprep.subr.mxu0 0.0
    %227 = vmatpush1.msra.mxu0 0.0
    %228 = vmatprep.subr.mxu0 0.0
    %229 = vmatpush1.msra.mxu0 0.0
    %230 = vmatprep.subr.mxu0 0.0
    %231 = vmatpush1.msra.mxu0 0.0
    %232 = vmatprep.subr.mxu0 0.0
    %233 = vmatpush1.msra.mxu0 0.0
    %234 = vmatprep.subr.mxu0 0.0
    %235 = vmatpush1.msra.mxu0 0.0
    %236 = vmatprep.subr.mxu0 0.0
    %237 = vmatpush1.msra.mxu0 0.0
    %238 = vmatprep.subr.mxu0 0.0
    %239 = vmatpush1.msra.mxu0 0.0
    %240 = vmatprep.subr.mxu0 0.0
    %241 = vmatpush1.msra.mxu0 0.0
    %242 = vmatprep.subr.mxu0 0.0
    %243 = vmatpush1.msra.mxu0 0.0
    %244 = vmatprep.subr.mxu0 0.0
    %245 = vmatpush1.msra.mxu0 0.0
    %246 = vmatprep.subr.mxu0 0.0
    %247 = vmatpush1.msra.mxu0 0.0
    %248 = vmatprep.subr.mxu0 0.0
    %249 = vmatpush1.msra.mxu0 0.0
    %250 = vmatprep.subr.mxu0 0.0
    %251 = vmatpush1.msra.mxu0 0.0
    %252 = vmatprep.subr.mxu0 0.0
    %253 = vmatpush1.msra.mxu0 0.0
    %254 = vmatprep.subr.mxu0 0.0
    %255 = vmatpush1.msra.mxu0 0.0
    %256 = vmatprep.subr.mxu0 0.0
    %257 = vmatpush1.msra.mxu0 0.0
    %258 = vmatprep.subr.mxu0 0.0
    %259 = vmatpush1.msra.mxu0 0.0
    %260 = vmatprep.subr.mxu0 0.0
    %261 = vmatpush1.msra.mxu0 0.0
    %262 = vmatprep.mubr.f32.mxu0 0.0
    %263 = vmatmul.mubr.f32.gmra.mrb[0].mxu0 %v196
    %v264 = vpop.f32.mrb[0].mxu0
    %v265 = vadd.f32 0.0, %v264
    %v266 = vpop.f32.mrb[0].mxu0
    %267 = vdwg.mxu0
    %v268 = vld [vmem:[#allocation4] sm:$0x3]
    %270 = vset.pattern.permute.xlu0 0
    %271 = vperm.xlu0 %270, %v76
    %v272 = vpop.permute.xlu0 %271
    %v274 = vmul.f32 %v272, %v268
    %v277 = vrot.slane %v265, 7
    %v278 = vsel %vm65, %v277, %v193
    %v280 = vadd.f32 %v274, %v278
    %vm281 = vcmask 254976
    %282 = vst.msk [vmem:[#allocation4] sm:$0x3] %vm281, %v280
    %283 = vst.msk [vmem:[#allocation2] sm:$0x3] %vm121, %v73
    // Predicated region
    $region18: #{tpu_custom_call.1} parent=1 // pred_check
      %p284 = pneg %p26
    $region19: #{tpu_custom_call.1} parent=1 // pred_check_branch
      %286 = sbr.rel (%p284) target = $region21
    $region20: #{tpu_custom_call.1} parent=1 // pred_region
      %v287 = vld [vmem:[#allocation3] sm:$0x3]
      %v288 = vrcp.pop %v287
      %v289 = vld [vmem:[#allocation4] sm:$0x3]
      %291 = vset.pattern.permute.xlu0 0
      %292 = vperm.xlu0 %291, %v288
      %v293 = vpop.permute.xlu0 %292
      %v295 = vmul.f32 %v289, %v293
      %296 = vst.msk [vmem:[#allocation8] sm:$0x3] %vm281, %v295
    $region21: #{tpu_custom_call.1} parent=1 // pred_fallthru
      _
    // Predicated region
    $region22: #{tpu_custom_call.1} parent=1 // pred_check
      _
    $region23: #{tpu_custom_call.1} parent=1 // pred_check_branch
      %298 = sbr.rel (0) target = $region25
    $region24: #{tpu_custom_call.1} parent=1 // pred_region
      %s300 = ssub.s32 32, 32
      %301 = vsyncadd [#allocation7], %s300
      %s303 = sshll.u32 [#allocation8], 4
      %s304 = int_to_ptr.vmem [resolvable:$true] %s303
      %306 = dma.vmem_to_hbm [thread:$0]  %s304, 32, %s2, [#allocation7]
    $region25: #{tpu_custom_call.1} parent=1 // pred_fallthru
      _
    // Predicated region
    $region26: #{tpu_custom_call.1} parent=1 // pred_check
      _
    $region27: #{tpu_custom_call.1} parent=1 // pred_check_branch
      %308 = sbr.rel (0) target = $region29
    $region28: #{tpu_custom_call.1} parent=1 // pred_region
      %309 = dma.done [#allocation7], 32
    $region29: #{tpu_custom_call.1} parent=1 // pred_fallthru
      _
    %310 = vsyncpa [#allocation6], 1
    %311 = vsyncpa [#allocation7], 1

</llo_original>
